<compile_context>
chip_gen: v6e
topology: v6e:2x2x1
jax: 0.10.0
libtpu: 0.0.40
codegen_flags: <defaults>
</compile_context>

<pallas_src>
import math
import functools

import jax
import jax.numpy as jnp
from jax import lax
from jax.experimental import pallas as pl
from jax.experimental.pallas import tpu as pltpu


# ----------------------------------------------------------------------------
# Kernel: positional-encoding add + (optional) inverted dropout
# ----------------------------------------------------------------------------
def _pe_dropout_kernel(seed_ref, x_ref, pe_ref, o_ref, *,
                       batch: int, p: float, apply_dropout: bool):
    # x_ref / o_ref : (tm, D) lane-dense blocks of the flattened [S*B, D] tensor
    # pe_ref        : (ts, D) block of pe, ts = tm // batch sequence positions
    tm, d = x_ref.shape

    # Broadcast pe over the batch dim: each pe row is repeated `batch` times
    # along sublanes so it lines up with the flattened (s, b) rows of x.
    pe_rows = jnp.repeat(pe_ref[...], batch, axis=0)          # (ts, D) -> (tm, D)
    y = x_ref[...] + pe_rows

    if apply_dropout:
        keep_prob = 1.0 - p
        # Integer threshold: keep  <=>  hash_bits < keep_prob * 2^32
        threshold = jnp.uint32(min(int(round(keep_prob * 4294967296.0)),
                                   4294967295))

        # Global element id (independent of tiling): ((s*B + b) * D + d)
        row0 = pl.program_id(0) * tm
        rows = lax.broadcasted_iota(jnp.int32, (tm, d), 0) + row0
        cols = lax.broadcasted_iota(jnp.int32, (tm, d), 1)
        gid = rows * d + cols

        # Counter-based PRNG: seed-mixed murmur3 fmix32 finalizer (pure VPU work,
        # hidden under the HBM stream; works on TPU and in interpret mode).
        z = gid.astype(jnp.uint32) + seed_ref[0].astype(jnp.uint32) * jnp.uint32(0x9E3779B9)
        z = z ^ (z >> 16)
        z = z * jnp.uint32(0x85EBCA6B)
        z = z ^ (z >> 13)
        z = z * jnp.uint32(0xC2B2AE35)
        z = z ^ (z >> 16)

        keep = z < threshold
        y = jnp.where(keep, y * jnp.float32(1.0 / keep_prob), jnp.zeros_like(y))

    o_ref[...] = y.astype(o_ref.dtype)


# ----------------------------------------------------------------------------
# Tile-size selection: sequence positions per tile, multiple of 8, so that the
# x block (ts*B, D) is ~2 MiB.  Double-buffered x/out/pe blocks then stay well
# under the 16 MiB (v5e) / 32 MiB (v6e, v7x) default scoped-VMEM limits.
# ----------------------------------------------------------------------------
def _choose_seq_tile(S: int, B: int, D: int, dtype_bytes: int,
                     target_block_bytes: int = 2 << 20) -> int:
    ts = target_block_bytes // max(1, B * D * dtype_bytes)
    ts = (ts // 8) * 8
    if ts < 8 or ts >= S:
        return S          # single full block (always a legal block shape)
    return ts


# ----------------------------------------------------------------------------
# Wrapper
# ----------------------------------------------------------------------------
def positional_encoding_forward(x, pe, seed, *, p: float = 0.1,
                                training: bool = True, seq_tile: int | None = None):
    """x: [S, B, D] float32, pe: [max_len, 1, D] float32, seed: int scalar."""
    S, B, D = x.shape
    x2 = x.reshape(S * B, D)          # free, contiguous: lane-dense 2-D slab
    pe2 = pe[:S, 0, :]                # [S, D] (parameter setup / glue)

    apply_dropout = bool(training) and p > 0.0
    ts = seq_tile if seq_tile is not None else _choose_seq_tile(
        S, B, D, x.dtype.itemsize)
    tm = ts * B                       # rows of the flattened tensor per tile
    grid = (pl.cdiv(S, ts),)

    kernel = functools.partial(_pe_dropout_kernel, batch=B, p=float(p),
                               apply_dropout=apply_dropout)
    seed_arr = jnp.asarray([seed], dtype=jnp.int32)

    grid_spec = pltpu.PrefetchScalarGridSpec(
        num_scalar_prefetch=1,
        grid=grid,
        in_specs=[
            pl.BlockSpec((tm, D), lambda i, seed_ref: (i, 0)),   # x  (flattened)
            pl.BlockSpec((ts, D), lambda i, seed_ref: (i, 0)),   # pe
        ],
        out_specs=pl.BlockSpec((tm, D), lambda i, seed_ref: (i, 0)),
    )

    out2 = pl.pallas_call(
        kernel,
        out_shape=jax.ShapeDtypeStruct((S * B, D), x.dtype),
        grid_spec=grid_spec,
        compiler_params=pltpu.CompilerParams(
            dimension_semantics=("parallel",)),       # independent tiles -> 2 TCs on v7x
    )(seed_arr, x2, pe2)

    return out2.reshape(S, B, D)


# ----------------------------------------------------------------------------
# Deterministic buffer construction, matching the PyTorch __init__
# ----------------------------------------------------------------------------
def make_positional_encoding_buffer(d_model: int, max_len: int = 5000):
    position = jnp.arange(max_len, dtype=jnp.float32)[:, None]          # [L, 1]
    div_term = jnp.exp(
        jnp.arange(0, d_model, 2, dtype=jnp.float32)
        * (-math.log(10000.0) / d_model))                               # [D/2]
    pe = jnp.zeros((max_len, 1, d_model), dtype=jnp.float32)
    pe = pe.at[:, 0, 0::2].set(jnp.sin(position * div_term))
    pe = pe.at[:, 0, 1::2].set(jnp.cos(position * div_term))
    return pe


# ----------------------------------------------------------------------------
# Main
# ----------------------------------------------------------------------------
if __name__ == "__main__":
    S, B, D = 8, 2, 32            # seq_len, batch, d_model (small test shapes)
    max_len = 64
    p = 0.1

    key = jax.random.PRNGKey(0)
    x = jax.random.normal(key, (S, B, D), dtype=jnp.float32)
    pe = make_positional_encoding_buffer(D, max_len)

    # 1) eval-mode path (dropout = identity): exact match vs pure-JAX reference
    out_eval = positional_encoding_forward(x, pe, seed=0, p=p, training=False)
    out_eval = jax.block_until_ready(out_eval)
    ref = x + pe[:S]
    assert out_eval.shape == (S, B, D)
    assert jnp.allclose(out_eval, ref, atol=1e-6, rtol=1e-6), "eval-path mismatch"

    # 2) training-mode path (inverted dropout, deterministic stateless hash PRNG)
    out_train = positional_encoding_forward(x, pe, seed=1234, p=p, training=True)
    out_train = jax.block_until_ready(out_train)
    assert out_train.shape == (S, B, D)
    # every surviving element equals (x + pe) / (1 - p); dropped elements are 0
    ref_scaled = ref / (1.0 - p)
    kept = out_train != 0
    assert jnp.allclose(jnp.where(kept, out_train, ref_scaled), ref_scaled,
                        atol=1e-5, rtol=1e-5), "train-path kept-value mismatch"
    drop_frac = 1.0 - float(jnp.mean(kept.astype(jnp.float32)))
    assert 0.0 < drop_frac < 0.5, f"implausible dropout fraction {drop_frac}"

    print("KERNEL_OK")
</pallas_src>

<mosaic_0001>
module attributes {stable_mosaic.version = 11 : i64} {
  func.func @_pe_dropout_kernel(%arg0: i32, %arg1: memref<1xi32, #tpu.memory_space<smem>>, %arg2: memref<16x32xf32, #tpu.memory_space<vmem>>, %arg3: memref<8x32xf32, #tpu.memory_space<vmem>>, %arg4: memref<16x32xf32, #tpu.memory_space<vmem>>) attributes {dimension_semantics = [#tpu.dimension_semantics<parallel>], iteration_bounds = array<i64: 1>, scalar_prefetch = 1 : i64, scratch_operands = 0 : i64, tpu.core_type = #tpu.core_type<tc>, window_params = [{transform_indices = @transform_0, window_bounds = array<i64: 16, 32>}, {transform_indices = @transform_1, window_bounds = array<i64: 8, 32>}, {transform_indices = @transform_2, window_bounds = array<i64: 16, 32>}]} {
    %c0 = arith.constant 0 : index
    %c0_0 = arith.constant 0 : index
    %0 = vector.load %arg3[%c0, %c0_0] : memref<8x32xf32, #tpu.memory_space<vmem>>, vector<8x32xf32>
    %1 = vector.shape_cast %0 : vector<8x32xf32> to vector<8x1x32xf32>
    %2 = vector.broadcast %1 : vector<8x1x32xf32> to vector<8x2x32xf32>
    %3 = vector.shape_cast %2 : vector<8x2x32xf32> to vector<16x32xf32>
    %c0_1 = arith.constant 0 : index
    %c0_2 = arith.constant 0 : index
    %4 = vector.load %arg2[%c0_1, %c0_2] : memref<16x32xf32, #tpu.memory_space<vmem>>, vector<16x32xf32>
    %5 = arith.addf %4, %3 : vector<16x32xf32>
    %c0_3 = arith.constant 0 : index
    %c0_4 = arith.constant 0 : index
    %6 = vector.load %arg4[%c0_3, %c0_4] : memref<16x32xf32, #tpu.memory_space<vmem>>, vector<16x32xf32>
    tpu.vector_store %arg4[%c0_3, %c0_4], %5 {strides = array<i32>} : memref<16x32xf32, #tpu.memory_space<vmem>>, vector<16x32xf32>,
    return
  }
  func.func @transform_0(%arg0: i32, %arg1: memref<1xi32, #tpu.memory_space<smem>>) -> (i32, i32) {
    %c0_i32 = arith.constant 0 : i32
    %c0_i32_0 = arith.constant 0 : i32
    return %arg0, %c0_i32 : i32, i32
  }
  func.func @transform_1(%arg0: i32, %arg1: memref<1xi32, #tpu.memory_space<smem>>) -> (i32, i32) {
    %c0_i32 = arith.constant 0 : i32
    %c0_i32_0 = arith.constant 0 : i32
    return %arg0, %c0_i32 : i32, i32
  }
  func.func @transform_2(%arg0: i32, %arg1: memref<1xi32, #tpu.memory_space<smem>>) -> (i32, i32) {
    %c0_i32 = arith.constant 0 : i32
    %c0_i32_0 = arith.constant 0 : i32
    return %arg0, %c0_i32 : i32, i32
  }
}

</mosaic_0001>

<llo_original>
// kernel: tpu_custom_call.1
$region0: #{tpu_custom_call.1}
  #allocation0 [shape = 'u32[]', space=smem, size = 0x4, offset = 0x4, fixed_abs, tag = 'smem constant byte address 0x4 - core index']
  #allocation1 [shape = 'u32[144,128]{1,0:T(1,128)}', space=vmem, size = 0x12000, scoped, tag = 'internal scratch']
  #allocation2 [shape = 's32[1]{0}', space=sflag, size = 0x4, scoped, tag = 'scoped memory for tpu_custom_call.1']
  #allocation3 [shape = 's32[1]{0:T(128)S(6)}', space=smem, size = 0x200, scoped, tag = 'prefetched SMEM operand 0']
  %s0 = inlined_call_operand.<no memory space> [shape: s32[1], index: 0, kind: input, shape index: {}]
  %s1 = inlined_call_operand.hbm [shape: f32[16,32], index: 1, kind: input, shape index: {}]
  %s2 = inlined_call_operand.hbm [shape: f32[8,32], index: 2, kind: input, shape index: {}]
  %s3 = inlined_call_operand.hbm [shape: f32[16,32], index: 3, kind: output, shape index: {}]
  %s4 = sld [smem:[#allocation0]]
  $region26: #{tpu_custom_call.1} parent=0
    _
  %s6 = ssub.s32 1, %s4
  %s7 = scalar_select 0, %s6, %s4
  %8 = sst [smem:[#allocation3]] %s0
  $region1: #{tpu_custom_call.1} parent=0
    #allocation4 [shape = 'u8[8192]{0}', space=vmem, size = 0x2000, scoped, tag = 'input window, operand 1, single buffered']
    #allocation5 [shape = 's32[1]{0}', space=sflag, size = 0x4, scoped, tag = 'scoped memory for tpu_custom_call.1']
    #allocation6 [shape = 's32[1]{0}', space=sflag, size = 0x4, scoped, tag = 'scoped memory for tpu_custom_call.1']
    #allocation7 [shape = 'u8[4096]{0}', space=vmem, size = 0x1000, scoped, tag = 'input window, operand 2, single buffered']
    #allocation8 [shape = 's32[1]{0}', space=sflag, size = 0x4, scoped, tag = 'scoped memory for tpu_custom_call.1']
    #allocation9 [shape = 'u8[8192]{0}', space=vmem, size = 0x2000, scoped, tag = 'output window, operand 0, single buffered']
    %9 = vsyncpa [#allocation5], 0
    %10 = vsyncpa [#allocation8], 0
    %11 = vsyncpa [#allocation6], 0
    // Predicated region
    $region2: #{tpu_custom_call.1} parent=1 // pred_check
      _
    $region3: #{tpu_custom_call.1} parent=1 // pred_check_branch
      %13 = sbr.rel (0) target = $region5
    $region4: #{tpu_custom_call.1} parent=1 // pred_region
      %s15 = ssub.s32 256, 256
      %16 = vsyncadd [#allocation5], %s15
      %s17 = sshll.u32 [#allocation4], 4
      %s18 = int_to_ptr.vmem [resolvable:$true] %s17
      %23 = dma.hbm_to_vmem [thread:$0]  %s1, 256, %s18, [#allocation5], 128, 128, 8
    $region5: #{tpu_custom_call.1} parent=1 // pred_fallthru
      _
    // Predicated region
    $region6: #{tpu_custom_call.1} parent=1 // pred_check
      _
    $region7: #{tpu_custom_call.1} parent=1 // pred_check_branch
      %25 = sbr.rel (0) target = $region9
    $region8: #{tpu_custom_call.1} parent=1 // pred_region
      %s27 = ssub.s32 128, 128
      %28 = vsyncadd [#allocation8], %s27
      %s30 = sshll.u32 [#allocation7], 4
      %s31 = int_to_ptr.vmem [resolvable:$true] %s30
      %33 = dma.hbm_to_vmem [thread:$0]  %s2, 128, %s31, [#allocation8]
    $region9: #{tpu_custom_call.1} parent=1 // pred_fallthru
      _
    // Predicated region
    $region10: #{tpu_custom_call.1} parent=1 // pred_check
      _
    $region11: #{tpu_custom_call.1} parent=1 // pred_check_branch
      %35 = sbr.rel (0) target = $region13
    $region12: #{tpu_custom_call.1} parent=1 // pred_region
      %36 = dma.done [#allocation5], 256
    $region13: #{tpu_custom_call.1} parent=1 // pred_fallthru
      _
    // Predicated region
    $region14: #{tpu_custom_call.1} parent=1 // pred_check
      _
    $region15: #{tpu_custom_call.1} parent=1 // pred_check_branch
      %38 = sbr.rel (0) target = $region17
    $region16: #{tpu_custom_call.1} parent=1 // pred_region
      %39 = dma.done [#allocation8], 128
    $region17: #{tpu_custom_call.1} parent=1 // pred_fallthru
      _
    %v40 = vld [vmem:[#allocation7] sm:$0xff]
    %v42 = vcombine.high %v40, %v40
    %v44 = vunpack.c.l.s4 1966171168
    %v45 = vunpack.c.0.s8 %v44
    %v46 = vlaneseq
    %v47 = vshrl.u32 %v46, 7
    %v48 = vsub.s32 %v45, %v47
    %v49 = vrot.slane %v40, %v48
    %v51 = vunpack.c.l.s4 1966171168
    %v52 = vunpack.c.0.s8 %v51
    %v53 = vlaneseq
    %v54 = vshrl.u32 %v53, 7
    %v55 = vsub.s32 %v52, %v54
    %v56 = vrot.slane %v42, %v55
    %v57 = vcombine.high %v49, %v49
    %v58 = vcombine.high %v56, %v56
    %v60 = vunpack.c.l.s4 1966171168
    %v61 = vunpack.c.0.s8 %v60
    %v62 = vlaneseq
    %v63 = vshrl.u32 %v62, 7
    %v64 = vsub.s32 %v61, %v63
    %v65 = vrot.slane %v49, %v64
    %v67 = vunpack.c.l.s4 1966171168
    %v68 = vunpack.c.0.s8 %v67
    %v69 = vlaneseq
    %v70 = vshrl.u32 %v69, 7
    %v71 = vsub.s32 %v68, %v70
    %v72 = vrot.slane %v56, %v71
    %v74 = vunpack.c.l.s4 1966171168
    %v75 = vunpack.c.0.s8 %v74
    %v76 = vlaneseq
    %v77 = vshrl.u32 %v76, 7
    %v78 = vsub.s32 %v75, %v77
    %v79 = vrot.slane %v57, %v78
    %v81 = vunpack.c.l.s4 1966171168
    %v82 = vunpack.c.0.s8 %v81
    %v83 = vlaneseq
    %v84 = vshrl.u32 %v83, 7
    %v85 = vsub.s32 %v82, %v84
    %v86 = vrot.slane %v58, %v85
    %v87 = vcombine.high %v65, %v65
    %v88 = vcombine.high %v72, %v72
    %v89 = vcombine.high %v79, %v79
    %v90 = vcombine.high %v86, %v86
    %v91 = vlaneseq
    %v92 = vshrl.u32 %v91, 7
    %v93 = vsub.s32 0, %v92
    %v94 = vrot.slane %v65, %v93
    %v95 = vlaneseq
    %v96 = vshrl.u32 %v95, 7
    %v97 = vsub.s32 0, %v96
    %v98 = vrot.slane %v79, %v97
    %v99 = vlaneseq
    %v100 = vshrl.u32 %v99, 7
    %v101 = vsub.s32 0, %v100
    %v102 = vrot.slane %v87, %v101
    %v103 = vlaneseq
    %v104 = vshrl.u32 %v103, 7
    %v105 = vsub.s32 0, %v104
    %v106 = vrot.slane %v89, %v105
    %v107 = vlaneseq
    %v108 = vshrl.u32 %v107, 7
    %v109 = vsub.s32 0, %v108
    %v110 = vrot.slane %v72, %v109
    %v111 = vlaneseq
    %v112 = vshrl.u32 %v111, 7
    %v113 = vsub.s32 0, %v112
    %v114 = vrot.slane %v86, %v113
    %v115 = vlaneseq
    %v116 = vshrl.u32 %v115, 7
    %v117 = vsub.s32 0, %v116
    %v118 = vrot.slane %v88, %v117
    %v119 = vlaneseq
    %v120 = vshrl.u32 %v119, 7
    %v121 = vsub.s32 0, %v120
    %v122 = vrot.slane %v90, %v121
    %v123 = vld [vmem:[#allocation4] sm:$0xff]
    %v124 = vld [vmem:[#allocation4 + $0x8] sm:$0xff]
    %v125 = vcombine.low %v94, %v98
    %v126 = vcombine.low %v102, %v106
    %v128 = vunpack.c.l.s4 1983009808
    %v129 = vunpack.c.0.s8 %v128
    %v130 = vlaneseq
    %v131 = vshrl.u32 %v130, 7
    %v132 = vsub.s32 %v129, %v131
    %v133 = vrot.slane %v125, %v132
    %v135 = vunpack.c.l.s4 1983009808
    %v136 = vunpack.c.0.s8 %v135
    %v137 = vlaneseq
    %v138 = vshrl.u32 %v137, 7
    %v139 = vsub.s32 %v136, %v138
    %v140 = vrot.slane %v126, %v139
    %v141 = vcombine.low %v133, %v140
    %v142 = vcombine.low %v110, %v114
    %v143 = vcombine.low %v118, %v122
    %v145 = vunpack.c.l.s4 1983009808
    %v146 = vunpack.c.0.s8 %v145
    %v147 = vlaneseq
    %v148 = vshrl.u32 %v147, 7
    %v149 = vsub.s32 %v146, %v148
    %v150 = vrot.slane %v142, %v149
    %v152 = vunpack.c.l.s4 1983009808
    %v153 = vunpack.c.0.s8 %v152
    %v154 = vlaneseq
    %v155 = vshrl.u32 %v154, 7
    %v156 = vsub.s32 %v153, %v155
    %v157 = vrot.slane %v143, %v156
    %v158 = vcombine.low %v150, %v157
    %v161 = vadd.f32 %v123, %v141
    %v162 = vadd.f32 %v124, %v158
    %vm163 = vcmask 261120
    %164 = vst.msk [vmem:[#allocation9] sm:$0xff] %vm163, %v161
    %165 = vst.msk [vmem:[#allocation9 + $0x8] sm:$0xff] %vm163, %v162
    // Predicated region
    $region18: #{tpu_custom_call.1} parent=1 // pred_check
      _
    $region19: #{tpu_custom_call.1} parent=1 // pred_check_branch
      %167 = sbr.rel (0) target = $region21
    $region20: #{tpu_custom_call.1} parent=1 // pred_region
      %s169 = ssub.s32 256, 256
      %170 = vsyncadd [#allocation6], %s169
      %s171 = sshll.u32 [#allocation9], 4
      %s172 = int_to_ptr.vmem [resolvable:$true] %s171
      %177 = dma.vmem_to_hbm [thread:$0]  %s172, 256, %s3, [#allocation6], 128, 128, 8
    $region21: #{tpu_custom_call.1} parent=1 // pred_fallthru
      _
    // Predicated region
    $region22: #{tpu_custom_call.1} parent=1 // pred_check
      _
    $region23: #{tpu_custom_call.1} parent=1 // pred_check_branch
      %179 = sbr.rel (0) target = $region25
    $region24: #{tpu_custom_call.1} parent=1 // pred_region
      %180 = dma.done [#allocation6], 256
    $region25: #{tpu_custom_call.1} parent=1 // pred_fallthru
      _
    %181 = vsyncpa [#allocation5], 1
    %182 = vsyncpa [#allocation8], 1
    %183 = vsyncpa [#allocation6], 1

</llo_original>
